<compile_context>
chip_gen: v7x
topology: tpu7x:2x2x1
jax: 0.10.0
libtpu: 0.0.40
codegen_flags: <defaults>
</compile_context>

<pallas_src>
import numpy as np
import jax
import jax.numpy as jnp
from jax import lax
from jax.experimental import pallas as pl
from jax.experimental.pallas import tpu as pltpu


# ----------------------------------------------------------------------------
# Kernel 1: student log-softmax + BT normalization + Gram, teacher softmax,
#           restructured DINO CE, center EMA.   grid = (n_crops,)
# ----------------------------------------------------------------------------
def _make_prep_kernel(n_crops, n_global, batch, dim, student_temp, center_momentum):
    inv_st = 1.0 / float(student_temp)
    inv_bm1 = 1.0 / float(batch - 1) if batch > 1 else 1.0   # torch.std (unbiased)
    dino_scale = 1.0 / float(batch * n_global * (n_crops - 1))
    cent_scale = (1.0 - float(center_momentum)) / float(n_global * batch)
    cm = float(center_momentum)

    def kernel(tt_ref, s_ref, t_ref, c_ref,
               dino_ref, cent_ref, zns_ref, g_ref,
               ls_sum_ref, tsum_ref):
        i = pl.program_id(0)
        inv_tt = 1.0 / tt_ref[0]

        @pl.when(i == 0)
        def _():
            ls_sum_ref[...] = jnp.zeros_like(ls_sum_ref)
            tsum_ref[...] = jnp.zeros_like(tsum_ref)
            dino_ref[...] = jnp.zeros_like(dino_ref)
            cent_ref[...] = c_ref[...] * cm

        # ---- student crop i: log-softmax (DINO) + BT normalization + Gram --
        s = s_ref[0] * inv_st                               # (B, D)
        sl = s - jnp.max(s, axis=-1, keepdims=True)
        lse = jnp.log(jnp.sum(jnp.exp(sl), axis=-1, keepdims=True))
        ls = sl - lse                                       # log-softmax
        ls_sum_ref[...] += ls

        # Barlow-Twins per-feature normalization over the batch
        # TODO(synk): torch reference (z - mean) / std has no epsilon; a zero-
        # variance feature yields Inf here exactly as in the reference.
        mu = jnp.mean(s, axis=0, keepdims=True)
        d0 = s - mu
        var = jnp.sum(d0 * d0, axis=0, keepdims=True) * inv_bm1
        zn = d0 * lax.rsqrt(var)                            # rsqrt-multiply (EUP)
        zns_ref[0] = zn.astype(zns_ref.dtype)
        # TODO(synk): storing zns as bf16 would halve kernel-2 HBM traffic;
        # kept f32 here for fidelity to the f32 torch reference.
        zb = zn.astype(jnp.bfloat16)                        # native MXU operands
        g_ref[0] = lax.dot_general(zb, zb, (((1,), (1,)), ((), ())),
                                   preferred_element_type=jnp.float32)

        # ---- teacher crop i (only for i < n_global): softmax + CE + EMA ----
        @pl.when(i < n_global)
        def _():
            t = t_ref[0]                                    # (B, D) raw teacher
            cent_ref[...] += jnp.sum(t, axis=0, keepdims=True) * cent_scale
            tl = (t - c_ref[...]) * inv_tt
            tl = tl - jnp.max(tl, axis=-1, keepdims=True)
            te = jnp.exp(tl)
            t_soft = te * (1.0 / jnp.sum(te, axis=-1, keepdims=True))  # exact
            tsum_ref[...] += t_soft
            dino_ref[...] += jnp.sum(t_soft * ls)           # positive pairing term

        @pl.when(i == n_crops - 1)
        def _():
            # sum_{t, s != t} <t_t, -ls_s> = <T_sum, -ls_sum> - sum_t <t_t, -ls_t>
            dino_ref[...] = (dino_ref[...]
                             - jnp.sum(tsum_ref[...] * ls_sum_ref[...])) * dino_scale

    return kernel


# ----------------------------------------------------------------------------
# Kernel 2: Barlow-Twins loss from per-crop Grams + column-tiled diag reduce.
#           grid = (num_feature_column_tiles,)
# ----------------------------------------------------------------------------
def _make_bt_kernel(n_crops, batch, lmbda):
    pairs = [(i, j) for i in range(n_crops) for j in range(i + 1, n_crops)]
    inv_b = 1.0 / float(batch)
    inv_b2 = inv_b * inv_b
    lam = float(lmbda)

    def kernel(g_ref, z_ref, out_ref):
        n = pl.program_id(0)

        @pl.when(n == 0)
        def _():
            # sum(cc^2) for pair (i,j) == <G_i, G_j>_F / B^2  (tiny B x B reduce)
            acc = jnp.float32(0.0)
            for (i, j) in pairs:
                acc += jnp.sum(g_ref[i] * g_ref[j])
            out_ref[...] = jnp.full((8, 128), acc * (lam * inv_b2), jnp.float32)

        # Diagonal contributions for this column range, all crops resident.
        part = jnp.float32(0.0)
        for (i, j) in pairs:
            zi = z_ref[i].astype(jnp.float32)               # (B, TN)
            zj = z_ref[j].astype(jnp.float32)
            d = jnp.sum(zi * zj, axis=0, keepdims=True) * inv_b      # diag slice
            part += jnp.sum((d - 1.0) ** 2) - lam * jnp.sum(d * d)
        out_ref[...] += part

    return kernel


def _pick_col_tile(dim, n_crops, batch, max_block_bytes=8 << 20):
    if dim <= 2048:
        return dim
    for t in (2048, 1024, 512, 256, 128):
        if dim % t == 0 and n_crops * batch * t * 4 <= max_block_bytes:
            return t
    for t in (2048, 1024, 512, 256, 128):
        if dim % t == 0:
            return t
    # TODO(synk): pad D to a multiple of 128 (with on-diag correction for the
    # padded columns) when D has no 128-aligned divisor.
    return dim


# ----------------------------------------------------------------------------
# Module wrapper
# ----------------------------------------------------------------------------
class DinowTwinsLoss2Pallas:
    def __init__(self, *, n_crops, n_global_crops, out_channels, center_momentum,
                 student_temp, teacher_temp, warmup_teacher_temp,
                 warmup_teacher_temp_epochs, lmbda, bt_beta, max_epochs):
        self.n_crops = n_crops
        self.n_global_crops = n_global_crops
        self.out_channels = out_channels
        self.center_momentum = center_momentum
        self.student_temp = student_temp
        self.teacher_temp = teacher_temp
        self.lmbda = lmbda
        self.bt_beta = bt_beta
        self.center = jnp.zeros((1, out_channels), jnp.float32)   # buffer
        self.teacher_temp_schedule = np.concatenate((
            np.linspace(warmup_teacher_temp, teacher_temp, warmup_teacher_temp_epochs),
            np.ones(max_epochs - warmup_teacher_temp_epochs) * teacher_temp))
        # TODO(synk): self.teacher_distrib / self.student_distrib are host-side
        # numpy logging attributes (softmax recomputed on CPU); not ported.

    def __call__(self, student_out, teacher_out, epoch):
        n_crops, ng = self.n_crops, self.n_global_crops
        n_s_rows, dim = student_out.shape
        n_t_rows, _ = teacher_out.shape
        assert n_s_rows % n_crops == 0 and n_t_rows % ng == 0
        batch = n_s_rows // n_crops
        assert n_t_rows // ng == batch and ng <= n_crops and n_crops > 1

        f32 = 4
        student3 = student_out.reshape(n_crops, batch, dim).astype(jnp.float32)
        teacher3 = teacher_out.reshape(ng, batch, dim).astype(jnp.float32)
        teacher_temp = jnp.asarray(
            [self.teacher_temp_schedule[int(epoch)]], dtype=jnp.float32)

        # ------------------------- call 1: prep kernel -----------------------
        # TODO(synk): for very large B*D per crop (v7x 64 MiB VMEM) the per-crop
        # body should additionally be column-tiled over D (two-pass LSE/var).
        prep_kernel = _make_prep_kernel(
            n_crops, ng, batch, dim,
            float(self.student_temp), float(self.center_momentum))

        blk_bd = batch * dim * f32
        bytes1 = (2 * blk_bd + 2 * blk_bd          # student/teacher double-buffered
                  + 2 * blk_bd                     # zns out double-buffered
                  + 2 * batch * batch * f32        # gram out double-buffered
                  + 2 * dim * f32 + 8 * 128 * f32  # center in/out, dino out
                  + 2 * blk_bd)                    # ls_sum + T_sum scratch
        vmem1 = int(min(48 << 20, max(4 << 20, int(bytes1 * 1.25))))

        dino_tile, new_center, zns, gram = pl.pallas_call(
            prep_kernel,
            out_shape=(
                jax.ShapeDtypeStruct((8, 128), jnp.float32),               # dino
                jax.ShapeDtypeStruct((1, dim), jnp.float32),               # center
                jax.ShapeDtypeStruct((n_crops, batch, dim), jnp.float32),  # zns
                jax.ShapeDtypeStruct((n_crops, batch, batch), jnp.float32),# grams
            ),
            grid_spec=pltpu.PrefetchScalarGridSpec(
                num_scalar_prefetch=1,
                grid=(n_crops,),
                in_specs=[
                    pl.BlockSpec((1, batch, dim), lambda i, tt: (i, 0, 0)),
                    pl.BlockSpec((1, batch, dim),
                                 lambda i, tt: (jnp.minimum(i, ng - 1), 0, 0)),
                    pl.BlockSpec((1, dim), lambda i, tt: (0, 0)),
                ],
                out_specs=(
                    pl.BlockSpec((8, 128), lambda i, tt: (0, 0)),
                    pl.BlockSpec((1, dim), lambda i, tt: (0, 0)),
                    pl.BlockSpec((1, batch, dim), lambda i, tt: (i, 0, 0)),
                    pl.BlockSpec((1, batch, batch), lambda i, tt: (i, 0, 0)),
                ),
                scratch_shapes=[pltpu.VMEM((batch, dim), jnp.float32),   # ls_sum
                                pltpu.VMEM((batch, dim), jnp.float32)],  # T_sum
            ),
            compiler_params=pltpu.CompilerParams(
                dimension_semantics=("arbitrary",),
                vmem_limit_bytes=vmem1),
        )(teacher_temp, student3, teacher3, self.center)

        # --------------------- call 2: BT reduce kernel ----------------------
        tn = _pick_col_tile(dim, n_crops, batch)
        n_tiles = dim // tn
        bt_kernel = _make_bt_kernel(n_crops, batch, float(self.lmbda))

        bytes2 = (n_crops * batch * batch * f32          # grams (resident)
                  + 2 * n_crops * batch * tn * f32       # zns column tiles, dbl-buf
                  + 8 * 128 * f32)
        vmem2 = int(min(48 << 20, max(4 << 20, int(bytes2 * 1.25))))

        bt_tile = pl.pallas_call(
            bt_kernel,
            out_shape=jax.ShapeDtypeStruct((8, 128), jnp.float32),
            grid_spec=pltpu.PrefetchScalarGridSpec(
                num_scalar_prefetch=0,
                grid=(n_tiles,),
                in_specs=[
                    pl.BlockSpec((n_crops, batch, batch), lambda n: (0, 0, 0)),
                    pl.BlockSpec((n_crops, batch, tn), lambda n: (0, 0, n)),
                ],
                out_specs=pl.BlockSpec((8, 128), lambda n: (0, 0)),
            ),
            compiler_params=pltpu.CompilerParams(
                dimension_semantics=("arbitrary",),
                vmem_limit_bytes=vmem2),
        )(gram, zns)

        num_bt_losses = n_crops * (n_crops - 1)
        # each unordered pair == 2 ordered pairs (cc and cc^T give identical loss)
        bt_loss = bt_tile[0, 0] * (2.0 * float(self.bt_beta)) / num_bt_losses
        dino_loss = dino_tile[0, 0]

        # buffer side-effect (EMA center update); thread functionally if this
        # wrapper is ever placed under jax.jit.
        self.center = new_center
        return dino_loss, bt_loss


# ----------------------------------------------------------------------------
# Demo
# ----------------------------------------------------------------------------
if __name__ == "__main__":
    n_crops, n_global_crops = 4, 2
    batch, out_channels = 8, 32
    max_epochs = 10

    loss_mod = DinowTwinsLoss2Pallas(
        n_crops=n_crops,
        n_global_crops=n_global_crops,
        out_channels=out_channels,
        center_momentum=0.9,
        student_temp=0.1,
        teacher_temp=0.04,
        warmup_teacher_temp=0.04,
        warmup_teacher_temp_epochs=5,
        lmbda=5e-3,
        bt_beta=1.0,
        max_epochs=max_epochs,
    )

    key = jax.random.PRNGKey(0)
    k1, k2 = jax.random.split(key)
    student_out = jax.random.normal(k1, (n_crops * batch, out_channels), jnp.float32)
    teacher_out = jax.random.normal(k2, (n_global_crops * batch, out_channels), jnp.float32)
    epoch = 3

    dino_loss, bt_loss = loss_mod(student_out, teacher_out, epoch)
    dino_loss = jax.block_until_ready(dino_loss)
    bt_loss = jax.block_until_ready(bt_loss)
    new_center = jax.block_until_ready(loss_mod.center)

    assert np.isfinite(float(dino_loss)) and np.isfinite(float(bt_loss))
    assert new_center.shape == (1, out_channels)
    print("KERNEL_OK")
</pallas_src>

<mosaic_0001>
module attributes {stable_mosaic.version = 11 : i64} {
  func.func @kernel(%arg0: i32, %arg1: memref<1xf32, #tpu.memory_space<smem>>, %arg2: memref<1x8x32xf32, #tpu.memory_space<vmem>>, %arg3: memref<1x8x32xf32, #tpu.memory_space<vmem>>, %arg4: memref<1x32xf32, #tpu.memory_space<vmem>>, %arg5: memref<8x128xf32, #tpu.memory_space<vmem>>, %arg6: memref<1x32xf32, #tpu.memory_space<vmem>>, %arg7: memref<1x8x32xf32, #tpu.memory_space<vmem>>, %arg8: memref<1x8x8xf32, #tpu.memory_space<vmem>>, %arg9: memref<8x32xf32, #tpu.memory_space<vmem>>, %arg10: memref<8x32xf32, #tpu.memory_space<vmem>>) attributes {dimension_semantics = [#tpu.dimension_semantics<arbitrary>], iteration_bounds = array<i64: 4>, scalar_prefetch = 1 : i64, scratch_operands = 2 : i64, tpu.core_type = #tpu.core_type<tc>, window_params = [{transform_indices = @transform_0, window_bounds = array<i64: 1, 8, 32>}, {transform_indices = @transform_1, window_bounds = array<i64: 1, 8, 32>}, {pipeline_mode = #tpu.pipeline_mode<synchronous>, transform_indices = @transform_2, window_bounds = array<i64: 1, 32>}, {pipeline_mode = #tpu.pipeline_mode<synchronous>, transform_indices = @transform_3, window_bounds = array<i64: 8, 128>}, {pipeline_mode = #tpu.pipeline_mode<synchronous>, transform_indices = @transform_4, window_bounds = array<i64: 1, 32>}, {transform_indices = @transform_5, window_bounds = array<i64: 1, 8, 32>}, {transform_indices = @transform_6, window_bounds = array<i64: 1, 8, 8>}]} {
    %c0 = arith.constant 0 : index
    %0 = memref.load %arg1[%c0] : memref<1xf32, #tpu.memory_space<smem>>
    %cst = arith.constant 1.000000e+00 : f32
    %1 = arith.divf %cst, %0 : f32
    %c0_i32 = arith.constant 0 : i32
    %2 = arith.cmpi eq, %arg0, %c0_i32 : i32
    %3 = arith.extui %2 : i1 to i32
    %c0_i32_0 = arith.constant 0 : i32
    %4 = arith.cmpi ne, %3, %c0_i32_0 : i32
    scf.if %4 {
      %cst_24 = arith.constant 0.000000e+00 : f32
      %50 = vector.broadcast %cst_24 : f32 to vector<8x32xf32>
      %c0_25 = arith.constant 0 : index
      %c0_26 = arith.constant 0 : index
      %51 = vector.load %arg9[%c0_25, %c0_26] : memref<8x32xf32, #tpu.memory_space<vmem>>, vector<8x32xf32>
      tpu.vector_store %arg9[%c0_25, %c0_26], %50 {strides = array<i32>} : memref<8x32xf32, #tpu.memory_space<vmem>>, vector<8x32xf32>,
      %cst_27 = arith.constant 0.000000e+00 : f32
      %52 = vector.broadcast %cst_27 : f32 to vector<8x32xf32>
      %c0_28 = arith.constant 0 : index
      %c0_29 = arith.constant 0 : index
      %53 = vector.load %arg10[%c0_28, %c0_29] : memref<8x32xf32, #tpu.memory_space<vmem>>, vector<8x32xf32>
      tpu.vector_store %arg10[%c0_28, %c0_29], %52 {strides = array<i32>} : memref<8x32xf32, #tpu.memory_space<vmem>>, vector<8x32xf32>,
      %cst_30 = arith.constant 0.000000e+00 : f32
      %54 = vector.broadcast %cst_30 : f32 to vector<8x128xf32>
      %c0_31 = arith.constant 0 : index
      %c0_32 = arith.constant 0 : index
      %55 = vector.load %arg5[%c0_31, %c0_32] : memref<8x128xf32, #tpu.memory_space<vmem>>, vector<8x128xf32>
      tpu.vector_store %arg5[%c0_31, %c0_32], %54 {strides = array<i32>} : memref<8x128xf32, #tpu.memory_space<vmem>>, vector<8x128xf32>,
      %c0_33 = arith.constant 0 : index
      %c0_34 = arith.constant 0 : index
      %56 = vector.load %arg4[%c0_33, %c0_34] : memref<1x32xf32, #tpu.memory_space<vmem>>, vector<1x32xf32>
      %cst_35 = arith.constant 0.899999976 : f32
      %57 = vector.broadcast %cst_35 : f32 to vector<1x32xf32>
      %58 = arith.mulf %56, %57 : vector<1x32xf32>
      %c0_36 = arith.constant 0 : index
      %c0_37 = arith.constant 0 : index
      %59 = vector.load %arg6[%c0_36, %c0_37] : memref<1x32xf32, #tpu.memory_space<vmem>>, vector<1x32xf32>
      tpu.vector_store %arg6[%c0_36, %c0_37], %58 {strides = array<i32>} : memref<1x32xf32, #tpu.memory_space<vmem>>, vector<1x32xf32>,
    } else {
    }
    %c0_1 = arith.constant 0 : index
    %c0_2 = arith.constant 0 : index
    %c0_3 = arith.constant 0 : index
    %5 = vector.load %arg2[%c0_1, %c0_2, %c0_3] : memref<1x8x32xf32, #tpu.memory_space<vmem>>, vector<1x8x32xf32>
    %6 = vector.shape_cast %5 : vector<1x8x32xf32> to vector<8x32xf32>
    %cst_4 = arith.constant 1.000000e+01 : f32
    %7 = vector.broadcast %cst_4 : f32 to vector<8x32xf32>
    %8 = arith.mulf %6, %7 : vector<8x32xf32>
    %cst_5 = arith.constant dense<0xFF800000> : vector<8xf32>
    %9 = vector.multi_reduction <maximumf>, %8, %cst_5 [1] : vector<8x32xf32> to vector<8xf32>
    %10 = vector.shape_cast %9 : vector<8xf32> to vector<8x1xf32>
    %11 = vector.broadcast %10 : vector<8x1xf32> to vector<8x32xf32>
    %12 = arith.subf %8, %11 : vector<8x32xf32>
    %13 = math.exp %12 : vector<8x32xf32>
    %cst_6 = arith.constant dense<0.000000e+00> : vector<8xf32>
    %14 = vector.multi_reduction <add>, %13, %cst_6 [1] : vector<8x32xf32> to vector<8xf32>
    %15 = vector.shape_cast %14 : vector<8xf32> to vector<8x1xf32>
    %16 = math.log %15 : vector<8x1xf32>
    %17 = vector.broadcast %16 : vector<8x1xf32> to vector<8x32xf32>
    %18 = arith.subf %12, %17 : vector<8x32xf32>
    %c0_7 = arith.constant 0 : index
    %c0_8 = arith.constant 0 : index
    %19 = vector.load %arg9[%c0_7, %c0_8] : memref<8x32xf32, #tpu.memory_space<vmem>>, vector<8x32xf32>
    %20 = arith.addf %19, %18 : vector<8x32xf32>
    %c0_9 = arith.constant 0 : index
    %c0_10 = arith.constant 0 : index
    %21 = vector.load %arg9[%c0_9, %c0_10] : memref<8x32xf32, #tpu.memory_space<vmem>>, vector<8x32xf32>
    tpu.vector_store %arg9[%c0_9, %c0_10], %20 {strides = array<i32>} : memref<8x32xf32, #tpu.memory_space<vmem>>, vector<8x32xf32>,
    %cst_11 = arith.constant dense<0.000000e+00> : vector<32xf32>
    %22 = vector.multi_reduction <add>, %8, %cst_11 [0] : vector<8x32xf32> to vector<32xf32>
    %23 = vector.shape_cast %22 : vector<32xf32> to vector<1x32xf32>
    %cst_12 = arith.constant 8.000000e+00 : f32
    %24 = vector.broadcast %cst_12 : f32 to vector<1x32xf32>
    %25 = arith.divf %23, %24 : vector<1x32xf32>
    %26 = vector.broadcast %25 : vector<1x32xf32> to vector<8x32xf32>
    %27 = arith.subf %8, %26 : vector<8x32xf32>
    %28 = arith.mulf %27, %27 : vector<8x32xf32>
    %cst_13 = arith.constant dense<0.000000e+00> : vector<32xf32>
    %29 = vector.multi_reduction <add>, %28, %cst_13 [0] : vector<8x32xf32> to vector<32xf32>
    %30 = vector.shape_cast %29 : vector<32xf32> to vector<1x32xf32>
    %cst_14 = arith.constant 0.142857149 : f32
    %31 = vector.broadcast %cst_14 : f32 to vector<1x32xf32>
    %32 = arith.mulf %30, %31 : vector<1x32xf32>
    %33 = math.rsqrt %32 : vector<1x32xf32>
    %34 = vector.broadcast %33 : vector<1x32xf32> to vector<8x32xf32>
    %35 = arith.mulf %27, %34 : vector<8x32xf32>
    %c0_15 = arith.constant 0 : index
    %c0_16 = arith.constant 0 : index
    %c0_17 = arith.constant 0 : index
    %36 = vector.load %arg7[%c0_15, %c0_16, %c0_17] : memref<1x8x32xf32, #tpu.memory_space<vmem>>, vector<1x8x32xf32>
    %37 = vector.shape_cast %36 : vector<1x8x32xf32> to vector<8x32xf32>
    %38 = vector.shape_cast %35 : vector<8x32xf32> to vector<1x8x32xf32>
    tpu.vector_store %arg7[%c0_15, %c0_16, %c0_17], %38 {strides = array<i32>} : memref<1x8x32xf32, #tpu.memory_space<vmem>>, vector<1x8x32xf32>,
    %39 = arith.truncf %35 : vector<8x32xf32> to vector<8x32xbf16>
    %cst_18 = arith.constant dense<0.000000e+00> : vector<8x8xf32>
    %40 = tpu.matmul %39, %39, %cst_18 {dimension_numbers = #tpu.dot_dimension_numbers<[1], [1], [0], [0], [0, 0, 1, 0], [], []>} : vector<8x32xbf16>, vector<8x32xbf16>, vector<8x8xf32> -> vector<8x8xf32>
    %c0_19 = arith.constant 0 : index
    %c0_20 = arith.constant 0 : index
    %c0_21 = arith.constant 0 : index
    %41 = vector.load %arg8[%c0_19, %c0_20, %c0_21] : memref<1x8x8xf32, #tpu.memory_space<vmem>>, vector<1x8x8xf32>
    %42 = vector.shape_cast %41 : vector<1x8x8xf32> to vector<8x8xf32>
    %43 = vector.shape_cast %40 : vector<8x8xf32> to vector<1x8x8xf32>
    tpu.vector_store %arg8[%c0_19, %c0_20, %c0_21], %43 {strides = array<i32>} : memref<1x8x8xf32, #tpu.memory_space<vmem>>, vector<1x8x8xf32>,
    %c2_i32 = arith.constant 2 : i32
    %44 = arith.cmpi slt, %arg0, %c2_i32 : i32
    %45 = arith.extui %44 : i1 to i32
    %c0_i32_22 = arith.constant 0 : i32
    %46 = arith.cmpi ne, %45, %c0_i32_22 : i32
    scf.if %46 {
      %c0_24 = arith.constant 0 : index
      %c0_25 = arith.constant 0 : index
      %c0_26 = arith.constant 0 : index
      %50 = vector.load %arg3[%c0_24, %c0_25, %c0_26] : memref<1x8x32xf32, #tpu.memory_space<vmem>>, vector<1x8x32xf32>
      %51 = vector.shape_cast %50 : vector<1x8x32xf32> to vector<8x32xf32>
      %c0_27 = arith.constant 0 : index
      %c0_28 = arith.constant 0 : index
      %52 = vector.load %arg6[%c0_27, %c0_28] : memref<1x32xf32, #tpu.memory_space<vmem>>, vector<1x32xf32>
      %cst_29 = arith.constant dense<0.000000e+00> : vector<32xf32>
      %53 = vector.multi_reduction <add>, %51, %cst_29 [0] : vector<8x32xf32> to vector<32xf32>
      %54 = vector.shape_cast %53 : vector<32xf32> to vector<1x32xf32>
      %cst_30 = arith.constant 6.250000e-03 : f32
      %55 = vector.broadcast %cst_30 : f32 to vector<1x32xf32>
      %56 = arith.mulf %54, %55 : vector<1x32xf32>
      %57 = arith.addf %52, %56 : vector<1x32xf32>
      %c0_31 = arith.constant 0 : index
      %c0_32 = arith.constant 0 : index
      %58 = vector.load %arg6[%c0_31, %c0_32] : memref<1x32xf32, #tpu.memory_space<vmem>>, vector<1x32xf32>
      tpu.vector_store %arg6[%c0_31, %c0_32], %57 {strides = array<i32>} : memref<1x32xf32, #tpu.memory_space<vmem>>, vector<1x32xf32>,
      %c0_33 = arith.constant 0 : index
      %c0_34 = arith.constant 0 : index
      %59 = vector.load %arg4[%c0_33, %c0_34] : memref<1x32xf32, #tpu.memory_space<vmem>>, vector<1x32xf32>
      %60 = vector.broadcast %59 : vector<1x32xf32> to vector<8x32xf32>
      %61 = arith.subf %51, %60 : vector<8x32xf32>
      %62 = vector.broadcast %1 : f32 to vector<8x32xf32>
      %63 = arith.mulf %61, %62 : vector<8x32xf32>
      %cst_35 = arith.constant dense<0xFF800000> : vector<8xf32>
      %64 = vector.multi_reduction <maximumf>, %63, %cst_35 [1] : vector<8x32xf32> to vector<8xf32>
      %65 = vector.shape_cast %64 : vector<8xf32> to vector<8x1xf32>
      %66 = vector.broadcast %65 : vector<8x1xf32> to vector<8x32xf32>
      %67 = arith.subf %63, %66 : vector<8x32xf32>
      %68 = math.exp %67 : vector<8x32xf32>
      %cst_36 = arith.constant dense<0.000000e+00> : vector<8xf32>
      %69 = vector.multi_reduction <add>, %68, %cst_36 [1] : vector<8x32xf32> to vector<8xf32>
      %70 = vector.shape_cast %69 : vector<8xf32> to vector<8x1xf32>
      %cst_37 = arith.constant 1.000000e+00 : f32
      %71 = vector.broadcast %cst_37 : f32 to vector<8x1xf32>
      %72 = arith.divf %71, %70 : vector<8x1xf32>
      %73 = vector.broadcast %72 : vector<8x1xf32> to vector<8x32xf32>
      %74 = arith.mulf %68, %73 : vector<8x32xf32>
      %c0_38 = arith.constant 0 : index
      %c0_39 = arith.constant 0 : index
      %75 = vector.load %arg10[%c0_38, %c0_39] : memref<8x32xf32, #tpu.memory_space<vmem>>, vector<8x32xf32>
      %76 = arith.addf %75, %74 : vector<8x32xf32>
      %c0_40 = arith.constant 0 : index
      %c0_41 = arith.constant 0 : index
      %77 = vector.load %arg10[%c0_40, %c0_41] : memref<8x32xf32, #tpu.memory_space<vmem>>, vector<8x32xf32>
      tpu.vector_store %arg10[%c0_40, %c0_41], %76 {strides = array<i32>} : memref<8x32xf32, #tpu.memory_space<vmem>>, vector<8x32xf32>,
      %c0_42 = arith.constant 0 : index
      %c0_43 = arith.constant 0 : index
      %78 = vector.load %arg5[%c0_42, %c0_43] : memref<8x128xf32, #tpu.memory_space<vmem>>, vector<8x128xf32>
      %79 = arith.mulf %74, %18 : vector<8x32xf32>
      %80 = vector.shape_cast %79 : vector<8x32xf32> to vector<1x8x32xf32>
      %cst_44 = arith.constant dense<0.000000e+00> : vector<1xf32>
      %81 = vector.multi_reduction <add>, %80, %cst_44 [1, 2] : vector<1x8x32xf32> to vector<1xf32>
      %82 = vector.shape_cast %81 : vector<1xf32> to vector<1x1x1xf32>
      %83 = vector.extract %82[0, 0, 0] : f32 from vector<1x1x1xf32>
      %84 = vector.broadcast %83 : f32 to vector<8x128xf32>
      %85 = arith.addf %78, %84 : vector<8x128xf32>
      %c0_45 = arith.constant 0 : index
      %c0_46 = arith.constant 0 : index
      %86 = vector.load %arg5[%c0_45, %c0_46] : memref<8x128xf32, #tpu.memory_space<vmem>>, vector<8x128xf32>
      tpu.vector_store %arg5[%c0_45, %c0_46], %85 {strides = array<i32>} : memref<8x128xf32, #tpu.memory_space<vmem>>, vector<8x128xf32>,
    } else {
    }
    %c3_i32 = arith.constant 3 : i32
    %47 = arith.cmpi eq, %arg0, %c3_i32 : i32
    %48 = arith.extui %47 : i1 to i32
    %c0_i32_23 = arith.constant 0 : i32
    %49 = arith.cmpi ne, %48, %c0_i32_23 : i32
    scf.if %49 {
      %c0_24 = arith.constant 0 : index
      %c0_25 = arith.constant 0 : index
      %50 = vector.load %arg5[%c0_24, %c0_25] : memref<8x128xf32, #tpu.memory_space<vmem>>, vector<8x128xf32>
      %c0_26 = arith.constant 0 : index
      %c0_27 = arith.constant 0 : index
      %51 = vector.load %arg10[%c0_26, %c0_27] : memref<8x32xf32, #tpu.memory_space<vmem>>, vector<8x32xf32>
      %c0_28 = arith.constant 0 : index
      %c0_29 = arith.constant 0 : index
      %52 = vector.load %arg9[%c0_28, %c0_29] : memref<8x32xf32, #tpu.memory_space<vmem>>, vector<8x32xf32>
      %53 = arith.mulf %51, %52 : vector<8x32xf32>
      %54 = vector.shape_cast %53 : vector<8x32xf32> to vector<1x8x32xf32>
      %cst_30 = arith.constant dense<0.000000e+00> : vector<1xf32>
      %55 = vector.multi_reduction <add>, %54, %cst_30 [1, 2] : vector<1x8x32xf32> to vector<1xf32>
      %56 = vector.shape_cast %55 : vector<1xf32> to vector<1x1x1xf32>
      %57 = vector.extract %56[0, 0, 0] : f32 from vector<1x1x1xf32>
      %58 = vector.broadcast %57 : f32 to vector<8x128xf32>
      %59 = arith.subf %50, %58 : vector<8x128xf32>
      %cst_31 = arith.constant 0.020833334 : f32
      %60 = vector.broadcast %cst_31 : f32 to vector<8x128xf32>
      %61 = arith.mulf %59, %60 : vector<8x128xf32>
      %c0_32 = arith.constant 0 : index
      %c0_33 = arith.constant 0 : index
      %62 = vector.load %arg5[%c0_32, %c0_33] : memref<8x128xf32, #tpu.memory_space<vmem>>, vector<8x128xf32>
      tpu.vector_store %arg5[%c0_32, %c0_33], %61 {strides = array<i32>} : memref<8x128xf32, #tpu.memory_space<vmem>>, vector<8x128xf32>,
    } else {
    }
    return
  }
  func.func @transform_0(%arg0: i32, %arg1: memref<1xf32, #tpu.memory_space<smem>>) -> (i32, i32, i32) {
    %c0_i32 = arith.constant 0 : i32
    %c0_i32_0 = arith.constant 0 : i32
    %c0_i32_1 = arith.constant 0 : i32
    return %arg0, %c0_i32, %c0_i32_0 : i32, i32, i32
  }
  func.func @transform_1(%arg0: i32, %arg1: memref<1xf32, #tpu.memory_space<smem>>) -> (i32, i32, i32) {
    %c1_i32 = arith.constant 1 : i32
    %0 = arith.minsi %arg0, %c1_i32 : i32
    %c0_i32 = arith.constant 0 : i32
    %c0_i32_0 = arith.constant 0 : i32
    %c0_i32_1 = arith.constant 0 : i32
    return %0, %c0_i32, %c0_i32_0 : i32, i32, i32
  }
  func.func @transform_2(%arg0: i32, %arg1: memref<1xf32, #tpu.memory_space<smem>>) -> (i32, i32) {
    %c0_i32 = arith.constant 0 : i32
    %c0_i32_0 = arith.constant 0 : i32
    %c0_i32_1 = arith.constant 0 : i32
    return %c0_i32, %c0_i32_0 : i32, i32
  }
  func.func @transform_3(%arg0: i32, %arg1: memref<1xf32, #tpu.memory_space<smem>>) -> (i32, i32) {
    %c0_i32 = arith.constant 0 : i32
    %c0_i32_0 = arith.constant 0 : i32
    %c0_i32_1 = arith.constant 0 : i32
    return %c0_i32, %c0_i32_0 : i32, i32
  }
  func.func @transform_4(%arg0: i32, %arg1: memref<1xf32, #tpu.memory_space<smem>>) -> (i32, i32) {
    %c0_i32 = arith.constant 0 : i32
    %c0_i32_0 = arith.constant 0 : i32
    %c0_i32_1 = arith.constant 0 : i32
    return %c0_i32, %c0_i32_0 : i32, i32
  }
  func.func @transform_5(%arg0: i32, %arg1: memref<1xf32, #tpu.memory_space<smem>>) -> (i32, i32, i32) {
    %c0_i32 = arith.constant 0 : i32
    %c0_i32_0 = arith.constant 0 : i32
    %c0_i32_1 = arith.constant 0 : i32
    return %arg0, %c0_i32, %c0_i32_0 : i32, i32, i32
  }
  func.func @transform_6(%arg0: i32, %arg1: memref<1xf32, #tpu.memory_space<smem>>) -> (i32, i32, i32) {
    %c0_i32 = arith.constant 0 : i32
    %c0_i32_0 = arith.constant 0 : i32
    %c0_i32_1 = arith.constant 0 : i32
    return %arg0, %c0_i32, %c0_i32_0 : i32, i32, i32
  }
}

</mosaic_0001>

<llo_original>
// kernel: tpu_custom_call.1
$region0: #{tpu_custom_call.1}
  #allocation0 [shape = 'u32[]', space=smem, size = 0x4, offset = 0x4, fixed_abs, tag = 'smem constant byte address 0x4 - core index']
  #allocation1 [shape = 'u32[144,128]{1,0:T(1,128)}', space=vmem, size = 0x12000, scoped, tag = 'internal scratch']
  #allocation2 [shape = 'f32[8,32]{1,0:T(8,128)}', space=vmem, size = 0x1000, scoped, tag = 'scratch operand']
  #allocation3 [shape = 'f32[8,32]{1,0:T(8,128)}', space=vmem, size = 0x1000, scoped, tag = 'scratch operand']
  #allocation4 [shape = 's32[1]{0}', space=sflag, size = 0x4, scoped, tag = 'scoped memory for tpu_custom_call.1']
  #allocation5 [shape = 'f32[1]{0:T(128)S(6)}', space=smem, size = 0x200, scoped, tag = 'prefetched SMEM operand 0']
  %s0 = inlined_call_operand.<no memory space> [shape: f32[1], index: 0, kind: input, shape index: {}]
  %s1 = inlined_call_operand.hbm [shape: f32[4,8,32], index: 1, kind: input, shape index: {}]
  %s2 = inlined_call_operand.hbm [shape: f32[2,8,32], index: 2, kind: input, shape index: {}]
  %s3 = inlined_call_operand.vmem [shape: f32[1,32], index: 3, kind: input, shape index: {}]
  %s4 = inlined_call_operand.hbm [shape: f32[8,128], index: 4, kind: output, shape index: {0}]
  %s5 = inlined_call_operand.hbm [shape: f32[1,32], index: 5, kind: output, shape index: {1}]
  %s6 = inlined_call_operand.hbm [shape: f32[4,8,32], index: 6, kind: output, shape index: {2}]
  %s7 = inlined_call_operand.hbm [shape: f32[4,8,8], index: 7, kind: output, shape index: {3}]
  %8 = xla_tuple %s4, %s5, %s6, %s7
  %s9 = sld [smem:[#allocation0]]
  $region89: #{tpu_custom_call.1} parent=0
    _
  %s11 = ssub.s32 1, %s9
  %s12 = scalar_select 0, %s11, %s9
  %13 = sst [smem:[#allocation5]] %s0
  $region1: #{tpu_custom_call.1} parent=0
    #allocation6 [shape = 'u8[8192]{0}', space=vmem, size = 0x2000, scoped, tag = 'input window, operand 1']
    #allocation7 [shape = 's32[2]{0}', space=sflag, size = 0x8, scoped, tag = 'scoped memory for tpu_custom_call.1']
    #allocation8 [shape = 's32[2]{0}', space=sflag, size = 0x8, scoped, tag = 'scoped memory for tpu_custom_call.1']
    #allocation9 [shape = 'u8[8192]{0}', space=vmem, size = 0x2000, scoped, tag = 'input window, operand 2']
    #allocation10 [shape = 's32[2]{0}', space=sflag, size = 0x8, scoped, tag = 'scoped memory for tpu_custom_call.1']
    #allocation11 [shape = 'u8[4096]{0}', space=vmem, size = 0x1000, scoped, tag = 'output window, operand 0, single buffered']
    #allocation12 [shape = 'u8[512]{0}', space=vmem, size = 0x400, scoped, tag = 'output window, operand 1, single buffered']
    #allocation13 [shape = 's32[1]{0}', space=sflag, size = 0x4, scoped, tag = 'scoped memory for tpu_custom_call.1']
    #allocation14 [shape = 'u8[8192]{0}', space=vmem, size = 0x2000, scoped, tag = 'output window, operand 2']
    #allocation15 [shape = 'u8[8192]{0}', space=vmem, size = 0x2000, scoped, tag = 'output window, operand 3']
    %14 = vsyncpa [#allocation7], 0
    %s15 = scalar_lea.sflag [#allocation7], 1
    %16 = vsyncpa %s15, 0
    %17 = vsyncpa [#allocation10], 0
    %s18 = scalar_lea.sflag [#allocation10], 1
    %19 = vsyncpa %s18, 0
    %20 = vsyncpa [#allocation8], 0
    %21 = vsyncpa [#allocation13], 0
    loop: start=0, step=1, limit=6
    $region2: #{tpu_custom_call.1} parent=1 // loop_pre_header
      _
    $region3: #{tpu_custom_call.1} parent=1 // loop_header
      %s23 = sphi 0, %s27
      %p24 = scmp.ge.s32.totalorder %s23, 6
      %s33 = sphi 0, %s35
      %s36 = sphi 0, %s33
      %s37 = sphi 0, %s36
      %s53 = sphi 0, %s37
      %s63 = sphi 0, %s65
      %s66 = sphi 0, %s63
      %s67 = sphi 0, %s66
      %s83 = sphi 0, %s67
      %s87 = sphi 0, %s87
      %s89 = sphi 0, %s87
      %s90 = sphi 0, %s89
      %s104 = sphi 0, %s90
      %s108 = sphi 0, %s108
      %s110 = sphi 0, %s108
      %s111 = sphi 0, %s110
      %s125 = sphi 0, %s111
      %s129 = sphi 0, %s129
      %s131 = sphi 0, %s129
      %s132 = sphi 0, %s131
      %s146 = sphi 0, %s132
      %s152 = sphi 0, %s154
      %s155 = sphi 0, %s152
      %s156 = sphi 0, %s155
      %s172 = sphi 0, %s156
      %s178 = sphi 0, %s180
      %s181 = sphi 0, %s178
      %s182 = sphi 0, %s181
      %s198 = sphi 0, %s182
    $region4: #{tpu_custom_call.1} parent=1 // loop_header_branch
      %26 = sbr.rel (%p24) target = $region8
    $region5: #{tpu_custom_call.1} parent=1 // loop_body
      %s28 = ssub.s32 %s23, 1
      %s29 = ssub.s32 %s23, 2
      %s30 = sadd.s32 %s23, 1
      %s31 = ssub.s32 %s23, %s30
      %p32 = scmp.eq.s32.totalorder %s31, 0
      %s34 = sadd.s32 %s33, 1
      %s35 = scalar_select %p32, %s33, %s34
      %p38 = pneg %p32
      %p39 = scmp.eq.s32.totalorder %s23, 3
      %p40 = por %p38, %p39
      %p41 = scmp.ne.s32.totalorder %s33, %s36
      %p42 = scmp.eq.s32.totalorder %s23, 0
      %p43 = por %p41, %p42
      %p44 = scmp.ne.s32.totalorder %s33, %s36
      %p45 = scmp.eq.s32.totalorder %s28, 3
      %p46 = por %p44, %p45
      %p47 = scmp.ne.s32.totalorder %s36, %s37
      %p48 = scmp.eq.s32.totalorder %s28, 0
      %p49 = por %p47, %p48
      %p50 = scmp.ne.s32.totalorder %s36, %s37
      %p51 = scmp.eq.s32.totalorder %s29, 3
      %p52 = por %p50, %p51
      %p54 = scmp.ne.s32.totalorder %s37, %s53
      %p55 = scmp.eq.s32.totalorder %s29, 0
      %p56 = por %p54, %p55
      %p57 = scmp.lt.s32.totalorder %s23, 1
      %s58 = scalar_select %p57, %s23, 1
      %p59 = scmp.lt.s32.totalorder %s30, 1
      %s60 = scalar_select %p59, %s30, 1
      %s61 = ssub.s32 %s58, %s60
      %p62 = scmp.eq.s32.totalorder %s61, 0
      %s64 = sadd.s32 %s63, 1
      %s65 = scalar_select %p62, %s63, %s64
      %p68 = pneg %p62
      %p69 = scmp.eq.s32.totalorder %s23, 3
      %p70 = por %p68, %p69
      %p71 = scmp.ne.s32.totalorder %s63, %s66
      %p72 = scmp.eq.s32.totalorder %s23, 0
      %p73 = por %p71, %p72
      %p74 = scmp.ne.s32.totalorder %s63, %s66
      %p75 = scmp.eq.s32.totalorder %s28, 3
      %p76 = por %p74, %p75
      %p77 = scmp.ne.s32.totalorder %s66, %s67
      %p78 = scmp.eq.s32.totalorder %s28, 0
      %p79 = por %p77, %p78
      %p80 = scmp.ne.s32.totalorder %s66, %s67
      %p81 = scmp.eq.s32.totalorder %s29, 3
      %p82 = por %p80, %p81
      %p84 = scmp.ne.s32.totalorder %s67, %s83
      %p85 = scmp.eq.s32.totalorder %s29, 0
      %p86 = por %p84, %p85
      %s88 = sadd.s32 %s87, 1
      %p91 = scmp.eq.s32.totalorder %s23, 3
      %p92 = scmp.ne.s32.totalorder %s87, %s89
      %p93 = scmp.eq.s32.totalorder %s23, 0
      %p94 = por %p92, %p93
      %p95 = scmp.ne.s32.totalorder %s87, %s89
      %p96 = scmp.eq.s32.totalorder %s28, 3
      %p97 = por %p95, %p96
      %p98 = scmp.ne.s32.totalorder %s89, %s90
      %p99 = scmp.eq.s32.totalorder %s28, 0
      %p100 = por %p98, %p99
      %p101 = scmp.ne.s32.totalorder %s89, %s90
      %p102 = scmp.eq.s32.totalorder %s29, 3
      %p103 = por %p101, %p102
      %p105 = scmp.ne.s32.totalorder %s90, %s104
      %p106 = scmp.eq.s32.totalorder %s29, 0
      %p107 = por %p105, %p106
      %s109 = sadd.s32 %s108, 1
      %p112 = scmp.eq.s32.totalorder %s23, 3
      %p113 = scmp.ne.s32.totalorder %s108, %s110
      %p114 = scmp.eq.s32.totalorder %s23, 0
      %p115 = por %p113, %p114
      %p116 = scmp.ne.s32.totalorder %s108, %s110
      %p117 = scmp.eq.s32.totalorder %s28, 3
      %p118 = por %p116, %p117
      %p119 = scmp.ne.s32.totalorder %s110, %s111
      %p120 = scmp.eq.s32.totalorder %s28, 0
      %p121 = por %p119, %p120
      %p122 = scmp.ne.s32.totalorder %s110, %s111
      %p123 = scmp.eq.s32.totalorder %s29, 3
      %p124 = por %p122, %p123
      %p126 = scmp.ne.s32.totalorder %s111, %s125
      %p127 = scmp.eq.s32.totalorder %s29, 0
      %p128 = por %p126, %p127
      %s130 = sadd.s32 %s129, 1
      %p133 = scmp.eq.s32.totalorder %s23, 3
      %p134 = scmp.ne.s32.totalorder %s129, %s131
      %p135 = scmp.eq.s32.totalorder %s23, 0
      %p136 = por %p134, %p135
      %p137 = scmp.ne.s32.totalorder %s129, %s131
      %p138 = scmp.eq.s32.totalorder %s28, 3
      %p139 = por %p137, %p138
      %p140 = scmp.ne.s32.totalorder %s131, %s132
      %p141 = scmp.eq.s32.totalorder %s28, 0
      %p142 = por %p140, %p141
      %p143 = scmp.ne.s32.totalorder %s131, %s132
      %p144 = scmp.eq.s32.totalorder %s29, 3
      %p145 = por %p143, %p144
      %p147 = scmp.ne.s32.totalorder %s132, %s146
      %p148 = scmp.eq.s32.totalorder %s29, 0
      %p149 = por %p147, %p148
      %s150 = ssub.s32 %s23, %s30
      %p151 = scmp.eq.s32.totalorder %s150, 0
      %s153 = sadd.s32 %s152, 1
      %s154 = scalar_select %p151, %s152, %s153
      %p157 = pneg %p151
      %p158 = scmp.eq.s32.totalorder %s23, 3
      %p159 = por %p157, %p158
      %p160 = scmp.ne.s32.totalorder %s152, %s155
      %p161 = scmp.eq.s32.totalorder %s23, 0
      %p162 = por %p160, %p161
      %p163 = scmp.ne.s32.totalorder %s152, %s155
      %p164 = scmp.eq.s32.totalorder %s28, 3
      %p165 = por %p163, %p164
      %p166 = scmp.ne.s32.totalorder %s155, %s156
      %p167 = scmp.eq.s32.totalorder %s28, 0
      %p168 = por %p166, %p167
      %p169 = scmp.ne.s32.totalorder %s155, %s156
      %p170 = scmp.eq.s32.totalorder %s29, 3
      %p171 = por %p169, %p170
      %p173 = scmp.ne.s32.totalorder %s156, %s172
      %p174 = scmp.eq.s32.totalorder %s29, 0
      %p175 = por %p173, %p174
      %s176 = ssub.s32 %s23, %s30
      %p177 = scmp.eq.s32.totalorder %s176, 0
      %s179 = sadd.s32 %s178, 1
      %s180 = scalar_select %p177, %s178, %s179
      %p183 = pneg %p177
      %p184 = scmp.eq.s32.totalorder %s23, 3
      %p185 = por %p183, %p184
      %p186 = scmp.ne.s32.totalorder %s178, %s181
      %p187 = scmp.eq.s32.totalorder %s23, 0
      %p188 = por %p186, %p187
      %p189 = scmp.ne.s32.totalorder %s178, %s181
      %p190 = scmp.eq.s32.totalorder %s28, 3
      %p191 = por %p189, %p190
      %p192 = scmp.ne.s32.totalorder %s181, %s182
      %p193 = scmp.eq.s32.totalorder %s28, 0
      %p194 = por %p192, %p193
      %p195 = scmp.ne.s32.totalorder %s181, %s182
      %p196 = scmp.eq.s32.totalorder %s29, 3
      %p197 = por %p195, %p196
      %p199 = scmp.ne.s32.totalorder %s182, %s198
      %p200 = scmp.eq.s32.totalorder %s29, 0
      %p201 = por %p199, %p200
      %p202 = scmp.le.s32.totalorder 1, %s23
      %p203 = scmp.lt.s32.totalorder %s23, 5
      %p204 = pnand %p202, %p203
      %p205 = pneg %p204
      // Predicated region
      $region9: #{tpu_custom_call.1} parent=5 // pred_check
        _
      $region10: #{tpu_custom_call.1} parent=5 // pred_check_branch
        %207 = sbr.rel (%p204) target = $region12
      $region11: #{tpu_custom_call.1} parent=5 // pred_region
        %s208 = ssub.s32 %s23, 1
        // Predicated region
        $region13: #{tpu_custom_call.1} parent=11 // pred_check
          %p209 = pneg %p100
        $region14: #{tpu_custom_call.1} parent=11 // pred_check_branch
          %211 = sbr.rel (%p209) target = $region16
        $region15: #{tpu_custom_call.1} parent=11 // pred_region
          _
        $region16: #{tpu_custom_call.1} parent=11 // pred_fallthru
          _
      $region12: #{tpu_custom_call.1} parent=5 // pred_fallthru
        _
      %p212 = scmp.lt.s32.totalorder %s23, 4
      // Predicated region
      $region17: #{tpu_custom_call.1} parent=5 // pred_check
        %p213 = pneg %p212
      $region18: #{tpu_custom_call.1} parent=5 // pred_check_branch
        %215 = sbr.rel (%p213) target = $region20
      $region19: #{tpu_custom_call.1} parent=5 // pred_region
        // Predicated region
        $region21: #{tpu_custom_call.1} parent=19 // pred_check
          %p216 = pneg %p43
        $region22: #{tpu_custom_call.1} parent=19 // pred_check_branch
          %218 = sbr.rel (%p216) target = $region24
        $region23: #{tpu_custom_call.1} parent=19 // pred_region
          %s219 = sand.u32 %s33, 1
          %s220 = scalar_lea.sflag [#allocation7], %s219
          %s221 = sand.u32 %s33, 1
          %s222 = smul.addr %s221, 8
          %s223 = scalar_lea.vmem [#allocation6], %s222
          %s225 = ssub.s32 128, 128
          %226 = vsyncadd %s220, %s225
          %s227 = smul.addr %s23, 128
          %s228 = scalar_lea.hbm %s1, %s227
          %s230 = sshll.u32 %s223, 4
          %s231 = int_to_ptr.vmem [resolvable:$true] %s230
          %233 = dma.hbm_to_vmem [thread:$0]  %s228, 128, %s231, %s220
        $region24: #{tpu_custom_call.1} parent=19 // pred_fallthru
          _
        // Predicated region
        $region25: #{tpu_custom_call.1} parent=19 // pred_check
          %p234 = pneg %p73
        $region26: #{tpu_custom_call.1} parent=19 // pred_check_branch
          %236 = sbr.rel (%p234) target = $region28
        $region27: #{tpu_custom_call.1} parent=19 // pred_region
          %s237 = sand.u32 %s63, 1
          %s238 = scalar_lea.sflag [#allocation10], %s237
          %s239 = sand.u32 %s63, 1
          %s240 = smul.addr %s239, 8
          %s241 = scalar_lea.vmem [#allocation9], %s240
          %p242 = scmp.lt.s32.totalorder %s23, 1
          %s243 = scalar_select %p242, %s23, 1
          %s245 = ssub.s32 128, 128
          %246 = vsyncadd %s238, %s245
          %s247 = smul.addr %s243, 128
          %s248 = scalar_lea.hbm %s2, %s247
          %s250 = sshll.u32 %s241, 4
          %s251 = int_to_ptr.vmem [resolvable:$true] %s250
          %253 = dma.hbm_to_vmem [thread:$0]  %s248, 128, %s251, %s238
        $region28: #{tpu_custom_call.1} parent=19 // pred_fallthru
          _
      $region20: #{tpu_custom_call.1} parent=5 // pred_fallthru
        _
      %p254 = scmp.le.s32.totalorder 1, %s23
      %p255 = scmp.lt.s32.totalorder %s23, 5
      %p256 = pnand %p254, %p255
      %p257 = pneg %p256
      // Predicated region
      $region29: #{tpu_custom_call.1} parent=5 // pred_check
        _
      $region30: #{tpu_custom_call.1} parent=5 // pred_check_branch
        %259 = sbr.rel (%p256) target = $region32
      $region31: #{tpu_custom_call.1} parent=5 // pred_region
        %s260 = ssub.s32 %s23, 1
        %s261 = sand.u32 %s36, 1
        %s262 = scalar_lea.sflag [#allocation7], %s261
        %s263 = sand.u32 %s36, 1
        %s264 = smul.addr %s263, 8
        %s265 = scalar_lea.vmem [#allocation6], %s264
        // Predicated region
        $region33: #{tpu_custom_call.1} parent=31 // pred_check
          %p266 = pneg %p49
        $region34: #{tpu_custom_call.1} parent=31 // pred_check_branch
          %268 = sbr.rel (%p266) target = $region36
        $region35: #{tpu_custom_call.1} parent=31 // pred_region
          %269 = dma.done %s262, 128
        $region36: #{tpu_custom_call.1} parent=31 // pred_fallthru
          _
        %s270 = sand.u32 %s66, 1
        %s271 = scalar_lea.sflag [#allocation10], %s270
        %s272 = sand.u32 %s66, 1
        %s273 = smul.addr %s272, 8
        %s274 = scalar_lea.vmem [#allocation9], %s273
        // Predicated region
        $region37: #{tpu_custom_call.1} parent=31 // pred_check
          %p275 = pneg %p79
        $region38: #{tpu_custom_call.1} parent=31 // pred_check_branch
          %277 = sbr.rel (%p275) target = $region40
        $region39: #{tpu_custom_call.1} parent=31 // pred_region
          %278 = dma.done %s271, 128
        $region40: #{tpu_custom_call.1} parent=31 // pred_fallthru
          _
        %s279 = sand.u32 %s36, 1
        %s280 = scalar_lea.sflag [#allocation7], %s279
        %s281 = sand.u32 %s36, 1
        %s282 = smul.addr %s281, 8
        %s283 = scalar_lea.vmem [#allocation6], %s282
        %p284 = pneg %p49
        %p285 = pneg %p46
        %s286 = sand.u32 %s66, 1
        %s287 = scalar_lea.sflag [#allocation10], %s286
        %s288 = sand.u32 %s66, 1
        %s289 = smul.addr %s288, 8
        %s290 = scalar_lea.vmem [#allocation9], %s289
        %p291 = pneg %p79
        %p292 = pneg %p76
        %p293 = pneg %p100
        %p294 = pneg %p97
        %p295 = pneg %p121
        %p296 = pneg %p118
        %p297 = pneg %p142
        %p298 = pneg %p139
        %p299 = pneg %p168
        %p300 = pneg %p165
        %s301 = sand.u32 %s28, 1
        %s302 = scalar_lea.sflag [#allocation8], %s301
        %s303 = sand.u32 %s155, 1
        %s304 = smul.addr %s303, 8
        %s305 = scalar_lea.vmem [#allocation14], %s304
        %p306 = pneg %p194
        %p307 = pneg %p191
        %s308 = sand.u32 %s28, 1
        %s309 = scalar_lea.sflag [#allocation8], %s308
        %s310 = sand.u32 %s181, 1
        %s311 = smul.addr %s310, 8
        %s312 = scalar_lea.vmem [#allocation15], %s311
        %p313 = scmp.lt.s32.totalorder %s28, 1
        %s314 = scalar_select %p313, %s28, 1
        %s316 = sld [smem:[#allocation5]]
        %v317 = vstv %s316
        %v318 = vrcp.pop %v317
        %s319 = vtos %v318
        %p320 = scmp.eq.s32.totalorder %s28, 0
        // Predicated region
        $region41: #{tpu_custom_call.1} parent=31 // pred_check
          %p321 = pneg %p320
        $region42: #{tpu_custom_call.1} parent=31 // pred_check_branch
          %323 = sbr.rel (%p321) target = $region44
        $region43: #{tpu_custom_call.1} parent=31 // pred_region
          %vm324 = vcmask 261120
          %325 = vst.msk [vmem:[#allocation2] sm:$0xff] %vm324, 0.0
          %326 = vst.msk [vmem:[#allocation3] sm:$0xff] %vm324, 0.0
          %327 = vst [vmem:[#allocation11] sm:$0xff] 0.0
          %v328 = vld [vmem:[%s3] sm:$0x1]
          %v329 = vmul.f32 %v328, 0.9
          %vm330 = vcmask 253952
          %331 = vst.msk [vmem:[#allocation12] sm:$0x1] %vm330, %v329
        $region44: #{tpu_custom_call.1} parent=31 // pred_fallthru
          _
        %v332 = vld [vmem:[%s265] sm:$0xff]
        %v333 = vmul.f32 %v332, 10.0
        %vm334 = vcmask 261120
        %v335 = vsel %vm334, %v333, -inf
        %336 = vmax.xlane.f32.xlu0 %v335
        %v337 = vpop.xlane.xlu0 %336
        %v338 = vsub.f32 %v333, %v337
        %v339 = vmul.f32 %v338, 1.442695
        %v340 = vpow.pop %v339
        %v341 = vsel %vm334, %v340, 0.0
        %342 = vadd.xlane.f32.xlu0 %v341
        %v343 = vpop.xlane.xlu0 %342
        %v344 = vlog2.pop %v343
        %v345 = vmul.f32 %v344, 0.6931472
        %v346 = vsub.f32 %v338, %v345
        %v347 = vld [vmem:[#allocation2] sm:$0xff]
        %v348 = vadd.f32 %v347, %v346
        %349 = vst.msk [vmem:[#allocation2] sm:$0xff] %vm334, %v348
        %v350 = vsel %vm334, %v333, 0.0
        %v351 = vrot.slane %v350, 4
        %v352 = vadd.f32 %v350, %v351
        %v353 = vrot.slane %v352, 2
        %v354 = vadd.f32 %v352, %v353
        %v355 = vrot.slane %v354, 1
        %v356 = vadd.f32 %v354, %v355
        %v357 = vrcp.pop 8.0
        %v358 = vmul.f32 %v356, %v357
        %v359 = vsub.f32 %v333, %v358
        %v360 = vmul.f32 %v359, %v359
        %v361 = vsel %vm334, %v360, 0.0
        %v362 = vrot.slane %v361, 4
        %v363 = vadd.f32 %v361, %v362
        %v364 = vrot.slane %v363, 2
        %v365 = vadd.f32 %v363, %v364
        %v366 = vrot.slane %v365, 1
        %v367 = vadd.f32 %v365, %v366
        %v368 = vmul.f32 %v367, 0.14285715
        %v369 = vrsqrt.pop %v368
        %v370 = vmul.f32 %v359, %v369
        %371 = vst.msk [vmem:[%s305] sm:$0xff] %vm334, %v370
        %v372 = vpack.c.bf16 %v370, %v370
        %v374 = vsel %vm334, %v372, 0
        %376 = vmatprep.subr.bf16.mxu0 0
        %377 = vmatpush1.bf16.xpose.msra.mxu0 %v374
        %378 = vmatprep.subr.bf16.mxu0 0
        %379 = vmatpush1.bf16.xpose.msra.mxu0 0
        %380 = vmatprep.subr.bf16.mxu0 0
        %381 = vmatpush1.bf16.xpose.msra.mxu0 0
        %382 = vmatprep.subr.bf16.mxu0 0
        %383 = vmatpush1.bf16.xpose.msra.mxu0 0
        %384 = vmatprep.subr.bf16.mxu0 0
        %385 = vmatpush1.bf16.xpose.msra.mxu0 0
        %386 = vmatprep.subr.bf16.mxu0 0
        %387 = vmatpush1.bf16.xpose.msra.mxu0 0
        %388 = vmatprep.subr.bf16.mxu0 0
        %389 = vmatpush1.bf16.xpose.msra.mxu0 0
        %390 = vmatprep.subr.bf16.mxu0 0
        %391 = vmatpush1.bf16.xpose.msra.mxu0 0
        %392 = vmatprep.subr.bf16.mxu0 0
        %393 = vmatpush1.bf16.xpose.msra.mxu0 0
        %394 = vmatprep.subr.bf16.mxu0 0
        %395 = vmatpush1.bf16.xpose.msra.mxu0 0
        %396 = vmatprep.subr.bf16.mxu0 0
        %397 = vmatpush1.bf16.xpose.msra.mxu0 0
        %398 = vmatprep.subr.bf16.mxu0 0
        %399 = vmatpush1.bf16.xpose.msra.mxu0 0
        %400 = vmatprep.subr.bf16.mxu0 0
        %401 = vmatpush1.bf16.xpose.msra.mxu0 0
        %402 = vmatprep.subr.bf16.mxu0 0
        %403 = vmatpush1.bf16.xpose.msra.mxu0 0
        %404 = vmatprep.subr.bf16.mxu0 0
        %405 = vmatpush1.bf16.xpose.msra.mxu0 0
        %406 = vmatprep.subr.bf16.mxu0 0
        %407 = vmatpush1.bf16.xpose.msra.mxu0 0
        %408 = vmatprep.mubr.bf16.mxu0 0
        %409 = vmatmul.mubr.bf16.gmra.mrb[0].mxu0 %v374
        %v410 = vpop.f32.mrb[0].mxu0
        %v411 = vadd.f32 0.0, %v410
        %v412 = vpop.f32.mrb[0].mxu0
        %v413 = vpop.f32.mrb[0].mxu0
        %v414 = vpop.f32.mrb[0].mxu0
        %415 = vdwg.mxu0
        %vm416 = vcmask 64512
        %417 = vst.msk [vmem:[%s312] sm:$0xff] %vm416, %v411
        %p418 = scmp.lt.s32.totalorder %s28, 2
        // Predicated region
        $region45: #{tpu_custom_call.1} parent=31 // pred_check
          %p419 = pneg %p418
        $region46: #{tpu_custom_call.1} parent=31 // pred_check_branch
          %421 = sbr.rel (%p419) target = $region48
        $region47: #{tpu_custom_call.1} parent=31 // pred_region
          %v422 = vld [vmem:[%s274] sm:$0xff]
          %v423 = vld [vmem:[#allocation12] sm:$0x1]
          %v424 = vsel %vm334, %v422, 0.0
          %v425 = vrot.slane %v424, 4
          %v426 = vadd.f32 %v424, %v425
          %v427 = vrot.slane %v426, 2
          %v428 = vadd.f32 %v426, %v427
          %v429 = vrot.slane %v428, 1
          %v430 = vadd.f32 %v428, %v429
          %v431 = vmul.f32 %v430, 0.00625
          %v432 = vadd.f32 %v423, %v431
          %vm433 = vcmask 253952
          %434 = vst.msk [vmem:[#allocation12] sm:$0x1] %vm433, %v432
          %v435 = vld [vmem:[%s3] sm:$0x1]
          %v437 = vlaneseq
          %v438 = vshrl.u32 %v437, 7
          %v439 = vsub.s32 0, %v438
          %v440 = vrot.slane %v435, %v439
          %v442 = vsub.f32 %v422, %v440
          %v443 = vstv %s319
          %v444 = vmul.f32 %v442, %v443
          %v445 = vsel %vm334, %v444, -inf
          %446 = vmax.xlane.f32.xlu0 %v445
          %v447 = vpop.xlane.xlu0 %446
          %v448 = vsub.f32 %v444, %v447
          %v449 = vmul.f32 %v448, 1.442695
          %v450 = vpow.pop %v449
          %v451 = vsel %vm334, %v450, 0.0
          %452 = vadd.xlane.f32.xlu0 %v451
          %v453 = vpop.xlane.xlu0 %452
          %v454 = vrcp.pop %v453
          %v455 = vmul.f32 1.0, %v454
          %v456 = vmul.f32 %v450, %v455
          %v457 = vld [vmem:[#allocation3] sm:$0xff]
          %v458 = vadd.f32 %v457, %v456
          %459 = vst.msk [vmem:[#allocation3] sm:$0xff] %vm334, %v458
          %v460 = vld [vmem:[#allocation11] sm:$0xff]
          %v461 = vmul.f32 %v456, %v346
          %v462 = vsel %vm334, %v461, 0.0
          %463 = vadd.xlane.f32.xlu0 %v462
          %v464 = vpop.xlane.xlu0 %463
          %v465 = vrot.slane %v464, 4
          %v466 = vadd.f32 %v464, %v465
          %v467 = vrot.slane %v466, 2
          %v468 = vadd.f32 %v466, %v467
          %v469 = vrot.slane %v468, 1
          %v470 = vadd.f32 %v468, %v469
          %s471 = vtos %v470
          %v472 = vstv %s471
          %v473 = vadd.f32 %v460, %v472
          %474 = vst [vmem:[#allocation11] sm:$0xff] %v473
        $region48: #{tpu_custom_call.1} parent=31 // pred_fallthru
          _
        %p475 = scmp.eq.s32.totalorder %s28, 3
        // Predicated region
        $region49: #{tpu_custom_call.1} parent=31 // pred_check
          %p476 = pneg %p475
        $region50: #{tpu_custom_call.1} parent=31 // pred_check_branch
          %478 = sbr.rel (%p476) target = $region52
        $region51: #{tpu_custom_call.1} parent=31 // pred_region
          %v479 = vld [vmem:[#allocation11] sm:$0xff]
          %v480 = vld [vmem:[#allocation3] sm:$0xff]
          %v481 = vld [vmem:[#allocation2] sm:$0xff]
          %v482 = vmul.f32 %v480, %v481
          %v483 = vsel %vm334, %v482, 0.0
          %484 = vadd.xlane.f32.xlu0 %v483
          %v485 = vpop.xlane.xlu0 %484
          %v486 = vrot.slane %v485, 4
          %v487 = vadd.f32 %v485, %v486
          %v488 = vrot.slane %v487, 2
          %v489 = vadd.f32 %v487, %v488
          %v490 = vrot.slane %v489, 1
          %v491 = vadd.f32 %v489, %v490
          %s492 = vtos %v491
          %v493 = vstv %s492
          %v494 = vsub.f32 %v479, %v493
          %v495 = vmul.f32 %v494, 0.020833334
          %496 = vst [vmem:[#allocation11] sm:$0xff] %v495
        $region52: #{tpu_custom_call.1} parent=31 // pred_fallthru
          _
        %s497 = sand.u32 %s28, 1
        %s498 = scalar_lea.sflag [#allocation8], %s497
        %s499 = sand.u32 %s155, 1
        %s500 = smul.addr %s499, 8
        %s501 = scalar_lea.vmem [#allocation14], %s500
        %s502 = sand.u32 %s28, 1
        %s503 = scalar_lea.sflag [#allocation8], %s502
        %s504 = sand.u32 %s181, 1
        %s505 = smul.addr %s504, 8
        %s506 = scalar_lea.vmem [#allocation15], %s505
        // Predicated region
        $region53: #{tpu_custom_call.1} parent=31 // pred_check
          %p507 = pneg %p118
        $region54: #{tpu_custom_call.1} parent=31 // pred_check_branch
          %509 = sbr.rel (%p507) target = $region56
        $region55: #{tpu_custom_call.1} parent=31 // pred_region
          %s511 = ssub.s32 128, 128
          %512 = vsyncadd [#allocation8], %s511
          %s514 = sshll.u32 [#allocation11], 4
          %s515 = int_to_ptr.vmem [resolvable:$true] %s514
          %517 = dma.vmem_to_hbm [thread:$0]  %s515, 128, %s4, [#allocation8]
        $region56: #{tpu_custom_call.1} parent=31 // pred_fallthru
          _
        // Predicated region
        $region57: #{tpu_custom_call.1} parent=31 // pred_check
          %p518 = pneg %p139
        $region58: #{tpu_custom_call.1} parent=31 // pred_check_branch
          %520 = sbr.rel (%p518) target = $region60
        $region59: #{tpu_custom_call.1} parent=31 // pred_region
          %s522 = ssub.s32 16, 16
          %523 = vsyncadd [#allocation13], %s522
          %s525 = sshll.u32 [#allocation12], 4
          %s526 = int_to_ptr.vmem [resolvable:$true] %s525
          %528 = dma.vmem_to_hbm [thread:$0]  %s526, 16, %s5, [#allocation13]
        $region60: #{tpu_custom_call.1} parent=31 // pred_fallthru
          _
        // Predicated region
        $region61: #{tpu_custom_call.1} parent=31 // pred_check
          %p529 = pneg %p165
        $region62: #{tpu_custom_call.1} parent=31 // pred_check_branch
          %531 = sbr.rel (%p529) target = $region64
        $region63: #{tpu_custom_call.1} parent=31 // pred_region
          %s533 = ssub.s32 128, 128
          %534 = vsyncadd %s498, %s533
          %s535 = smul.addr %s28, 128
          %s536 = scalar_lea.hbm %s6, %s535
          %s538 = sshll.u32 %s501, 4
          %s539 = int_to_ptr.vmem [resolvable:$true] %s538
          %541 = dma.vmem_to_hbm [thread:$0]  %s539, 128, %s536, %s498
        $region64: #{tpu_custom_call.1} parent=31 // pred_fallthru
          _
        // Predicated region
        $region65: #{tpu_custom_call.1} parent=31 // pred_check
          %p542 = pneg %p191
        $region66: #{tpu_custom_call.1} parent=31 // pred_check_branch
          %544 = sbr.rel (%p542) target = $region68
        $region67: #{tpu_custom_call.1} parent=31 // pred_region
          %s546 = ssub.s32 128, 128
          %547 = vsyncadd %s503, %s546
          %s548 = smul.addr %s28, 128
          %s549 = scalar_lea.hbm %s7, %s548
          %s551 = sshll.u32 %s506, 4
          %s552 = int_to_ptr.vmem [resolvable:$true] %s551
          %554 = dma.vmem_to_hbm [thread:$0]  %s552, 128, %s549, %s503
        $region68: #{tpu_custom_call.1} parent=31 // pred_fallthru
          _
        // Predicated region
        $region69: #{tpu_custom_call.1} parent=31 // pred_check
          %p555 = pneg %p118
        $region70: #{tpu_custom_call.1} parent=31 // pred_check_branch
          %557 = sbr.rel (%p555) target = $region72
        $region71: #{tpu_custom_call.1} parent=31 // pred_region
          %558 = dma.done [#allocation8], 128
        $region72: #{tpu_custom_call.1} parent=31 // pred_fallthru
          _
        // Predicated region
        $region73: #{tpu_custom_call.1} parent=31 // pred_check
          %p559 = pneg %p139
        $region74: #{tpu_custom_call.1} parent=31 // pred_check_branch
          %561 = sbr.rel (%p559) target = $region76
        $region75: #{tpu_custom_call.1} parent=31 // pred_region
          %562 = dma.done [#allocation13], 16
        $region76: #{tpu_custom_call.1} parent=31 // pred_fallthru
          _
      $region32: #{tpu_custom_call.1} parent=5 // pred_fallthru
        _
      %p563 = scmp.le.s32.totalorder 2, %s23
      // Predicated region
      $region77: #{tpu_custom_call.1} parent=5 // pred_check
        %p564 = pneg %p563
      $region78: #{tpu_custom_call.1} parent=5 // pred_check_branch
        %566 = sbr.rel (%p564) target = $region80
      $region79: #{tpu_custom_call.1} parent=5 // pred_region
        %s567 = ssub.s32 %s23, 2
        // Predicated region
        $region81: #{tpu_custom_call.1} parent=79 // pred_check
          %p568 = pneg %p171
        $region82: #{tpu_custom_call.1} parent=79 // pred_check_branch
          %570 = sbr.rel (%p568) target = $region84
        $region83: #{tpu_custom_call.1} parent=79 // pred_region
          %s571 = sand.u32 %s29, 1
          %s572 = scalar_lea.sflag [#allocation8], %s571
          %s573 = sand.u32 %s156, 1
          %s574 = smul.addr %s573, 8
          %s575 = scalar_lea.vmem [#allocation14], %s574
          %576 = dma.done %s572, 128
        $region84: #{tpu_custom_call.1} parent=79 // pred_fallthru
          _
        // Predicated region
        $region85: #{tpu_custom_call.1} parent=79 // pred_check
          %p577 = pneg %p197
        $region86: #{tpu_custom_call.1} parent=79 // pred_check_branch
          %579 = sbr.rel (%p577) target = $region88
        $region87: #{tpu_custom_call.1} parent=79 // pred_region
          %s580 = sand.u32 %s29, 1
          %s581 = scalar_lea.sflag [#allocation8], %s580
          %s582 = sand.u32 %s182, 1
          %s583 = smul.addr %s582, 8
          %s584 = scalar_lea.vmem [#allocation15], %s583
          %585 = dma.done %s581, 128
        $region88: #{tpu_custom_call.1} parent=79 // pred_fallthru
          _
      $region80: #{tpu_custom_call.1} parent=5 // pred_fallthru
        _
    $region6: #{tpu_custom_call.1} parent=1 // loop_footer
      %s27 = sadd.s32 1, %s23
    $region7: #{tpu_custom_call.1} parent=1 // loop_footer_branch
      %22 = sbr.rel target = $region3
    $region8: #{tpu_custom_call.1} parent=1 // loop_exit
      _
    %586 = vsyncpa [#allocation7], 1
    %s587 = scalar_lea.sflag [#allocation7], 1
    %588 = vsyncpa %s587, 1
    %589 = vsyncpa [#allocation10], 1
    %s590 = scalar_lea.sflag [#allocation10], 1
    %591 = vsyncpa %s590, 1
    %592 = vsyncpa [#allocation8], 1
    %s593 = scalar_lea.sflag [#allocation8], 1
    %594 = vsyncpa %s593, 1
    %595 = vsyncpa [#allocation13], 1

</llo_original>
